<compile_context>
chip_gen: v5e
topology: v5e:2x2
jax: 0.10.0
libtpu: 0.0.40
codegen_flags: <defaults>
</compile_context>

<pallas_src>
import functools

import jax
import jax.numpy as jnp
from jax.experimental import pallas as pl
from jax.experimental.pallas import tpu as pltpu


def _round_up(a: int, b: int) -> int:
    return (a + b - 1) // b * b


def _cdiv(a: int, b: int) -> int:
    return (a + b - 1) // b


# ---------------------------------------------------------------------------
# Kernel 1: tiled global average pool over the spatial axis.
# ---------------------------------------------------------------------------
def _pool_kernel(x_ref, o_ref, acc_ref, *, inv_hw, hw, thw, nk):
    """Row-mean over the spatial axis.

    x_ref  : (tr, thw)  input tile (global cols k*thw .. k*thw+thw-1)
    o_ref  : (1, 1, tr) lane-dense per-row-tile means
    acc_ref: (tr, 128)  f32 resident accumulator (VPU lane-group sums)
    """
    k = pl.program_id(1)

    @pl.when(k == 0)
    def _():
        acc_ref[...] = jnp.zeros_like(acc_ref)

    def accum(lo, hi, base, masked):
        # Accumulate tile columns [lo, hi) (static bounds) into acc_ref via
        # 128-lane-group VPU adds; slices are 128-aligned -> plain vreg loads.
        j = lo
        while j < hi:
            w = min(128, hi - j)
            xg = x_ref[:, j:j + w].astype(jnp.float32)
            if masked:
                col = base + j + jax.lax.broadcasted_iota(jnp.int32, xg.shape, 1)
                xg = jnp.where(col < hw, xg, 0.0)
            if w == 128:
                acc_ref[...] += xg
            else:
                acc_ref[:, :w] += xg
            j += w

    if nk == 1:
        # Single spatial step: block spans exactly [0, hw); nothing to mask.
        accum(0, thw, 0, masked=False)
    else:
        last_base = (nk - 1) * thw
        in_bounds = hw - last_base           # real columns in the last spatial tile

        @pl.when(k != nk - 1)
        def _():
            accum(0, thw, 0, masked=False)

        @pl.when(k == nk - 1)
        def _():
            nfull = (in_bounds // 128) * 128
            accum(0, nfull, last_base, masked=False)        # fully in-bounds groups
            if in_bounds > nfull:                           # straddling group: mask
                accum(nfull, nfull + 128, last_base, masked=True)
            # groups entirely past hw are skipped (their bytes are unspecified)

    @pl.when(k == nk - 1)
    def _():
        # One cross-lane reduce + one scale per row tile; lane-dense store.
        s = jnp.sum(acc_ref[...], axis=-1) * inv_hw          # (tr,)
        o_ref[...] = s.reshape(1, 1, -1).astype(o_ref.dtype)


def _global_avg_pool(x_flat):
    """x_flat: (R, HW). Returns (R,) f32 per-row means (no wrapper-side padding)."""
    R, HW = x_flat.shape
    eb = x_flat.dtype.itemsize
    budget = 2 * 1024 * 1024                 # ~2 MiB per in-flight input block

    # Spatial tiling: collapse to one step for modest rows, else stream
    # 2048-wide tiles and mask the ragged tail columns in-kernel.
    if HW <= 16384:
        thw, nk = HW, 1
    else:
        thw = 2048
        nk = _cdiv(HW, thw)

    # Row tile from the byte budget (multiple of 8; double-buffered total stays
    # well under every generation's scoped-VMEM default).
    tr = max(8, min((budget // (thw * eb)) // 8 * 8, 1024))
    tr = min(tr, _round_up(R, 8))
    if R >= 16:
        # Guarantee >= 2 row tiles so the "parallel" axis shards across both
        # v7x TensorCores (negligible extra grid overhead on v5e/v6e).
        tr = min(tr, _round_up(_cdiv(R, 2), 8))
    nr = _cdiv(R, tr)

    kernel = functools.partial(
        _pool_kernel, inv_hw=1.0 / float(HW), hw=HW, thw=thw, nk=nk)

    out = pl.pallas_call(
        kernel,
        out_shape=jax.ShapeDtypeStruct((nr, 1, tr), jnp.float32),
        grid_spec=pltpu.PrefetchScalarGridSpec(
            num_scalar_prefetch=0,
            grid=(nr, nk),
            in_specs=[pl.BlockSpec((tr, thw), lambda i, k: (i, k))],
            out_specs=pl.BlockSpec((1, 1, tr), lambda i, k: (i, 0, 0)),
            scratch_shapes=[pltpu.VMEM((tr, 128), jnp.float32)],
        ),
        compiler_params=pltpu.CompilerParams(
            dimension_semantics=("parallel", "arbitrary"),
        ),
    )(x_flat)
    # Boundary row tiles hold garbage rows; slice them off here.
    return out.reshape(nr * tr)[:R]


# ---------------------------------------------------------------------------
# Kernel 2: shared MLP (Linear -> ReLU -> Linear) + sigmoid.  Tiny; single shot.
# ---------------------------------------------------------------------------
def _mlp_sigmoid_kernel(p_ref, w1_ref, b1_ref, w2_ref, b2_ref, o_ref):
    pooled = p_ref[...]
    h = jnp.dot(pooled, w1_ref[...], preferred_element_type=jnp.float32) + b1_ref[...]
    h = jnp.maximum(h, 0.0)
    out = jnp.dot(h, w2_ref[...], preferred_element_type=jnp.float32) + b2_ref[...]
    o_ref[...] = jax.nn.sigmoid(out).astype(o_ref.dtype)


def channel_attention(x_nchw, w1, b1, w2, b2):
    """x_nchw: (B, C, H, W). Returns (B, C, 1, 1) sigmoid channel attention."""
    B, C, H, W = x_nchw.shape
    HW = H * W
    R = B * C
    mid = w1.shape[1]

    # --- Stage 1: global average pool (streaming, no padded copies) ---------
    x_flat = x_nchw.reshape(R, HW)                 # free view, no HBM copy
    pooled = _global_avg_pool(x_flat).reshape(B, C)   # (B, C) f32

    # --- Stage 2: shared MLP + sigmoid (single tiny invocation) -------------
    stage2_bytes = (pooled.size * 4
                    + w1.size * w1.dtype.itemsize + b1.size * b1.dtype.itemsize
                    + w2.size * w2.dtype.itemsize + b2.size * b2.dtype.itemsize
                    + B * C * x_nchw.dtype.itemsize)
    vmem_limit = None
    if stage2_bytes > (8 << 20):
        # Large-C guard: every operand is a single full VMEM block here.
        # TODO(synk): for C large enough that 1.5x operand bytes exceeds ~48 MiB,
        # tile the second matmul over C instead of raising the limit.
        vmem_limit = min(int(stage2_bytes * 1.5) + (2 << 20), 48 << 20)

    vmem = pl.BlockSpec(memory_space=pltpu.MemorySpace.VMEM)
    attn = pl.pallas_call(
        _mlp_sigmoid_kernel,
        out_shape=jax.ShapeDtypeStruct((B, C), x_nchw.dtype),
        in_specs=[vmem, vmem, vmem, vmem, vmem],
        out_specs=vmem,
        compiler_params=pltpu.CompilerParams(vmem_limit_bytes=vmem_limit),
    )(pooled, w1, b1.reshape(1, mid), w2, b2.reshape(1, C))

    return attn.reshape(B, C, 1, 1)


def init_params(key, channel, reduction=16):
    """Deterministic init mimicking nn.Linear shapes (stored pre-transposed)."""
    mid = channel // reduction
    k1, k2, k3, k4 = jax.random.split(key, 4)
    # PyTorch Linear: weight (out, in); we store W.T so the kernel does x @ W.
    bound1 = 1.0 / (channel ** 0.5)
    w1 = jax.random.uniform(k1, (channel, mid), jnp.float32, -bound1, bound1)
    b1 = jax.random.uniform(k2, (mid,), jnp.float32, -bound1, bound1)
    bound2 = 1.0 / (mid ** 0.5)
    w2 = jax.random.uniform(k3, (mid, channel), jnp.float32, -bound2, bound2)
    b2 = jax.random.uniform(k4, (channel,), jnp.float32, -bound2, bound2)
    return w1, b1, w2, b2


if __name__ == "__main__":
    key = jax.random.PRNGKey(0)
    kx, kp = jax.random.split(key)

    B, C, H, W = 2, 64, 16, 16          # channel=64, reduction=16 -> mid=4
    reduction = 16

    x = jax.random.normal(kx, (B, C, H, W), jnp.float32)
    w1, b1, w2, b2 = init_params(kp, C, reduction)

    y = jax.jit(channel_attention)(x, w1, b1, w2, b2)
    y = jax.block_until_ready(y)

    # Pure-JAX reference for sanity.
    pooled = jnp.mean(x, axis=(2, 3))
    h = jnp.maximum(pooled @ w1 + b1, 0.0)
    ref = jax.nn.sigmoid(h @ w2 + b2).reshape(B, C, 1, 1)

    assert y.shape == (B, C, 1, 1)
    assert jnp.allclose(y, ref, atol=1e-5, rtol=1e-5)
    print("KERNEL_OK")
</pallas_src>

<mosaic_0001>
module attributes {stable_mosaic.version = 11 : i64} {
  func.func @_pool_kernel(%arg0: i32, %arg1: i32, %arg2: memref<64x256xf32, #tpu.memory_space<vmem>>, %arg3: memref<1x1x64xf32, #tpu.memory_space<vmem>>, %arg4: memref<64x128xf32, #tpu.memory_space<vmem>>) attributes {dimension_semantics = [#tpu.dimension_semantics<parallel>, #tpu.dimension_semantics<arbitrary>], iteration_bounds = array<i64: 2, 1>, scalar_prefetch = 0 : i64, scratch_operands = 1 : i64, tpu.core_type = #tpu.core_type<tc>, window_params = [{transform_indices = @transform_0, window_bounds = array<i64: 64, 256>}, {transform_indices = @transform_1, window_bounds = array<i64: 1, 1, 64>}]} {
    %c0_i32 = arith.constant 0 : i32
    %0 = arith.cmpi eq, %arg1, %c0_i32 : i32
    %1 = arith.extui %0 : i1 to i32
    %c0_i32_0 = arith.constant 0 : i32
    %2 = arith.cmpi ne, %1, %c0_i32_0 : i32
    scf.if %2 {
      %cst = arith.constant 0.000000e+00 : f32
      %14 = vector.broadcast %cst : f32 to vector<64x128xf32>
      %c0_13 = arith.constant 0 : index
      %c0_14 = arith.constant 0 : index
      %15 = vector.load %arg4[%c0_13, %c0_14] : memref<64x128xf32, #tpu.memory_space<vmem>>, vector<64x128xf32>
      tpu.vector_store %arg4[%c0_13, %c0_14], %14 {strides = array<i32>} : memref<64x128xf32, #tpu.memory_space<vmem>>, vector<64x128xf32>,
    } else {
    }
    %c0 = arith.constant 0 : index
    %c0_1 = arith.constant 0 : index
    %3 = vector.load %arg2[%c0, %c0_1] : memref<64x256xf32, #tpu.memory_space<vmem>>, vector<64x128xf32>
    %c0_2 = arith.constant 0 : index
    %c0_3 = arith.constant 0 : index
    %4 = vector.load %arg4[%c0_2, %c0_3] : memref<64x128xf32, #tpu.memory_space<vmem>>, vector<64x128xf32>
    %5 = arith.addf %4, %3 : vector<64x128xf32>
    %c0_4 = arith.constant 0 : index
    %c0_5 = arith.constant 0 : index
    %6 = vector.load %arg4[%c0_4, %c0_5] : memref<64x128xf32, #tpu.memory_space<vmem>>, vector<64x128xf32>
    tpu.vector_store %arg4[%c0_4, %c0_5], %5 {strides = array<i32>} : memref<64x128xf32, #tpu.memory_space<vmem>>, vector<64x128xf32>,
    %c0_6 = arith.constant 0 : index
    %c128 = arith.constant 128 : index
    %7 = vector.load %arg2[%c0_6, %c128] : memref<64x256xf32, #tpu.memory_space<vmem>>, vector<64x128xf32>
    %c0_7 = arith.constant 0 : index
    %c0_8 = arith.constant 0 : index
    %8 = vector.load %arg4[%c0_7, %c0_8] : memref<64x128xf32, #tpu.memory_space<vmem>>, vector<64x128xf32>
    %9 = arith.addf %8, %7 : vector<64x128xf32>
    %c0_9 = arith.constant 0 : index
    %c0_10 = arith.constant 0 : index
    %10 = vector.load %arg4[%c0_9, %c0_10] : memref<64x128xf32, #tpu.memory_space<vmem>>, vector<64x128xf32>
    tpu.vector_store %arg4[%c0_9, %c0_10], %9 {strides = array<i32>} : memref<64x128xf32, #tpu.memory_space<vmem>>, vector<64x128xf32>,
    %c0_i32_11 = arith.constant 0 : i32
    %11 = arith.cmpi eq, %arg1, %c0_i32_11 : i32
    %12 = arith.extui %11 : i1 to i32
    %c0_i32_12 = arith.constant 0 : i32
    %13 = arith.cmpi ne, %12, %c0_i32_12 : i32
    scf.if %13 {
      %c0_13 = arith.constant 0 : index
      %c0_14 = arith.constant 0 : index
      %14 = vector.load %arg4[%c0_13, %c0_14] : memref<64x128xf32, #tpu.memory_space<vmem>>, vector<64x128xf32>
      %cst = arith.constant dense<0.000000e+00> : vector<64xf32>
      %15 = vector.multi_reduction <add>, %14, %cst [1] : vector<64x128xf32> to vector<64xf32>
      %cst_15 = arith.constant 3.906250e-03 : f32
      %16 = vector.broadcast %cst_15 : f32 to vector<64xf32>
      %17 = arith.mulf %15, %16 : vector<64xf32>
      %18 = vector.shape_cast %17 : vector<64xf32> to vector<1x1x64xf32>
      %c0_16 = arith.constant 0 : index
      %c0_17 = arith.constant 0 : index
      %c0_18 = arith.constant 0 : index
      %19 = vector.load %arg3[%c0_16, %c0_17, %c0_18] : memref<1x1x64xf32, #tpu.memory_space<vmem>>, vector<1x1x64xf32>
      tpu.vector_store %arg3[%c0_16, %c0_17, %c0_18], %18 {strides = array<i32>} : memref<1x1x64xf32, #tpu.memory_space<vmem>>, vector<1x1x64xf32>,
    } else {
    }
    return
  }
  func.func @transform_0(%arg0: i32, %arg1: i32) -> (i32, i32) {
    %c0_i32 = arith.constant 0 : i32
    return %arg0, %arg1 : i32, i32
  }
  func.func @transform_1(%arg0: i32, %arg1: i32) -> (i32, i32, i32) {
    %c0_i32 = arith.constant 0 : i32
    %c0_i32_0 = arith.constant 0 : i32
    %c0_i32_1 = arith.constant 0 : i32
    return %arg0, %c0_i32, %c0_i32_0 : i32, i32, i32
  }
}

module attributes {stable_mosaic.version = 11 : i64} {
  func.func @_mlp_sigmoid_kernel(%arg0: memref<2x64xf32, #tpu.memory_space<vmem>>, %arg1: memref<64x4xf32, #tpu.memory_space<vmem>>, %arg2: memref<1x4xf32, #tpu.memory_space<vmem>>, %arg3: memref<4x64xf32, #tpu.memory_space<vmem>>, %arg4: memref<1x64xf32, #tpu.memory_space<vmem>>, %arg5: memref<2x64xf32, #tpu.memory_space<vmem>>) attributes {dimension_semantics = [], scalar_prefetch = 0 : i64, scratch_operands = 0 : i64, tpu.core_type = #tpu.core_type<tc>} {
    %c0 = arith.constant 0 : index
    %c0_0 = arith.constant 0 : index
    %0 = vector.load %arg0[%c0, %c0_0] : memref<2x64xf32, #tpu.memory_space<vmem>>, vector<2x64xf32>
    %c0_1 = arith.constant 0 : index
    %c0_2 = arith.constant 0 : index
    %1 = vector.load %arg1[%c0_1, %c0_2] : memref<64x4xf32, #tpu.memory_space<vmem>>, vector<64x4xf32>
    %cst = arith.constant dense<0.000000e+00> : vector<2x4xf32>
    %2 = tpu.matmul %0, %1, %cst {dimension_numbers = #tpu.dot_dimension_numbers<[1], [0], [0], [1], [0, 0, 1, 1], [], []>} : vector<2x64xf32>, vector<64x4xf32>, vector<2x4xf32> -> vector<2x4xf32>
    %c0_3 = arith.constant 0 : index
    %c0_4 = arith.constant 0 : index
    %3 = vector.load %arg2[%c0_3, %c0_4] : memref<1x4xf32, #tpu.memory_space<vmem>>, vector<1x4xf32>
    %4 = vector.broadcast %3 : vector<1x4xf32> to vector<2x4xf32>
    %5 = arith.addf %2, %4 : vector<2x4xf32>
    %cst_5 = arith.constant 0.000000e+00 : f32
    %6 = vector.broadcast %cst_5 : f32 to vector<2x4xf32>
    %7 = arith.maximumf %5, %6 : vector<2x4xf32>
    %c0_6 = arith.constant 0 : index
    %c0_7 = arith.constant 0 : index
    %8 = vector.load %arg3[%c0_6, %c0_7] : memref<4x64xf32, #tpu.memory_space<vmem>>, vector<4x64xf32>
    %cst_8 = arith.constant dense<0.000000e+00> : vector<2x64xf32>
    %9 = tpu.matmul %7, %8, %cst_8 {dimension_numbers = #tpu.dot_dimension_numbers<[1], [0], [0], [1], [0, 0, 1, 1], [], []>} : vector<2x4xf32>, vector<4x64xf32>, vector<2x64xf32> -> vector<2x64xf32>
    %c0_9 = arith.constant 0 : index
    %c0_10 = arith.constant 0 : index
    %10 = vector.load %arg4[%c0_9, %c0_10] : memref<1x64xf32, #tpu.memory_space<vmem>>, vector<1x64xf32>
    %11 = vector.broadcast %10 : vector<1x64xf32> to vector<2x64xf32>
    %12 = arith.addf %9, %11 : vector<2x64xf32>
    %13 = arith.negf %12 : vector<2x64xf32>
    %14 = math.exp %13 : vector<2x64xf32>
    %cst_11 = arith.constant 1.000000e+00 : f32
    %15 = vector.broadcast %cst_11 : f32 to vector<2x64xf32>
    %16 = arith.addf %15, %14 : vector<2x64xf32>
    %17 = arith.divf %15, %16 : vector<2x64xf32>
    %c0_12 = arith.constant 0 : index
    %c0_13 = arith.constant 0 : index
    %18 = vector.load %arg5[%c0_12, %c0_13] : memref<2x64xf32, #tpu.memory_space<vmem>>, vector<2x64xf32>
    tpu.vector_store %arg5[%c0_12, %c0_13], %17 {strides = array<i32>} : memref<2x64xf32, #tpu.memory_space<vmem>>, vector<2x64xf32>,
    return
  }
}

</mosaic_0001>

<llo_original>
// kernel: channel_attention.2
$region0: #{channel_attention.2}
  #allocation0 [shape = 'u32[]', space=smem, size = 0x4, offset = 0x4, fixed_abs, tag = 'smem constant byte address 0x4 - core index']
  #allocation1 [shape = 'u32[72,128]{1,0:T(1,128)}', space=vmem, size = 0x9000, scoped, tag = 'internal scratch']
  #allocation2 [shape = 'f32[64,128]{1,0:T(8,128)}', space=vmem, size = 0x8000, scoped, tag = 'scratch operand']
  %s0 = inlined_call_operand.vmem [shape: f32[128,256], index: 0, kind: input, shape index: {}]
  %s1 = inlined_call_operand.vmem [shape: f32[2,1,64], index: 1, kind: output, shape index: {}]
  %s2 = sld [smem:[#allocation0]]
  $region45: #{channel_attention.2} parent=0
    _
  %s4 = ssub.s32 1, %s2
  %s5 = scalar_select 0, %s4, %s2
  loop: start=0, step=1, limit=4
  $region2: #{channel_attention.2} parent=0 // loop_pre_header
    _
  $region3: #{channel_attention.2} parent=0 // loop_header
    %s7 = sphi 0, %s11
    %p8 = scmp.ge.s32.totalorder %s7, 4
    %s14 = sphi 0, %s26
    %s15 = sphi 0, %s22
    %s16 = sphi 0, %s14
    %s17 = sphi 0, %s15
    %s18 = sphi 0, %s16
    %s19 = sphi 0, %s17
    %s31 = sphi 0, %s33
    %s34 = sphi 0, %s31
    %s35 = sphi 0, %s34
    %s51 = sphi 0, %s35
    %s57 = sphi 0, %s59
    %s60 = sphi 0, %s57
    %s61 = sphi 0, %s60
    %s77 = sphi 0, %s61
  $region4: #{channel_attention.2} parent=0 // loop_header_branch
    %10 = sbr.rel (%p8) target = $region8
  $region5: #{channel_attention.2} parent=0 // loop_body
    %s12 = ssub.s32 %s7, 1
    %s13 = ssub.s32 %s7, 2
    %s20 = sadd.s32 1, %s15
    %p21 = scmp.ge.s32.totalorder %s20, 1
    %s22 = scalar_select %p21, 0, %s20
    %s23 = sadd.s32 1, %s14
    %s24 = scalar_select %p21, %s23, %s14
    %p25 = scmp.ge.s32.totalorder %s24, 2
    %s26 = scalar_select %p25, 0, %s24
    %s27 = ssub.s32 %s14, %s26
    %s28 = ssub.s32 %s15, %s22
    %s29 = sor.u32 %s27, %s28
    %p30 = scmp.eq.s32.totalorder %s29, 0
    %s32 = sadd.s32 %s31, 1
    %s33 = scalar_select %p30, %s31, %s32
    %p36 = pneg %p30
    %p37 = scmp.eq.s32.totalorder %s7, 1
    %p38 = por %p36, %p37
    %p39 = scmp.ne.s32.totalorder %s31, %s34
    %p40 = scmp.eq.s32.totalorder %s7, 0
    %p41 = por %p39, %p40
    %p42 = scmp.ne.s32.totalorder %s31, %s34
    %p43 = scmp.eq.s32.totalorder %s12, 1
    %p44 = por %p42, %p43
    %p45 = scmp.ne.s32.totalorder %s34, %s35
    %p46 = scmp.eq.s32.totalorder %s12, 0
    %p47 = por %p45, %p46
    %p48 = scmp.ne.s32.totalorder %s34, %s35
    %p49 = scmp.eq.s32.totalorder %s13, 1
    %p50 = por %p48, %p49
    %p52 = scmp.ne.s32.totalorder %s35, %s51
    %p53 = scmp.eq.s32.totalorder %s13, 0
    %p54 = por %p52, %p53
    %s55 = ssub.s32 %s14, %s26
    %p56 = scmp.eq.s32.totalorder %s55, 0
    %s58 = sadd.s32 %s57, 1
    %s59 = scalar_select %p56, %s57, %s58
    %p62 = pneg %p56
    %p63 = scmp.eq.s32.totalorder %s7, 1
    %p64 = por %p62, %p63
    %p65 = scmp.ne.s32.totalorder %s57, %s60
    %p66 = scmp.eq.s32.totalorder %s7, 0
    %p67 = por %p65, %p66
    %p68 = scmp.ne.s32.totalorder %s57, %s60
    %p69 = scmp.eq.s32.totalorder %s12, 1
    %p70 = por %p68, %p69
    %p71 = scmp.ne.s32.totalorder %s60, %s61
    %p72 = scmp.eq.s32.totalorder %s12, 0
    %p73 = por %p71, %p72
    %p74 = scmp.ne.s32.totalorder %s60, %s61
    %p75 = scmp.eq.s32.totalorder %s13, 1
    %p76 = por %p74, %p75
    %p78 = scmp.ne.s32.totalorder %s61, %s77
    %p79 = scmp.eq.s32.totalorder %s13, 0
    %p80 = por %p78, %p79
    %p81 = scmp.le.s32.totalorder 1, %s7
    %p82 = scmp.lt.s32.totalorder %s7, 3
    %p83 = pnand %p81, %p82
    %p84 = pneg %p83
    // Predicated region
    $region9: #{channel_attention.2} parent=5 // pred_check
      _
    $region10: #{channel_attention.2} parent=5 // pred_check_branch
      %86 = sbr.rel (%p83) target = $region12
    $region11: #{channel_attention.2} parent=5 // pred_region
      %s87 = ssub.s32 %s7, 1
    $region12: #{channel_attention.2} parent=5 // pred_fallthru
      _
    %p88 = scmp.lt.s32.totalorder %s7, 2
    // Predicated region
    $region13: #{channel_attention.2} parent=5 // pred_check
      %p89 = pneg %p88
    $region14: #{channel_attention.2} parent=5 // pred_check_branch
      %91 = sbr.rel (%p89) target = $region16
    $region15: #{channel_attention.2} parent=5 // pred_region
      // Predicated region
      $region17: #{channel_attention.2} parent=15 // pred_check
        %p92 = pneg %p41
      $region18: #{channel_attention.2} parent=15 // pred_check_branch
        %94 = sbr.rel (%p92) target = $region20
      $region19: #{channel_attention.2} parent=15 // pred_region
        %s95 = smul.u32 8, %s14
        %s96 = smul.u32 2, %s15
        %p97 = scmp.lt.s32.totalorder %s95, 15
        %s98 = scalar_select %p97, %s95, 15
        %p99 = scmp.lt.s32.totalorder %s96, 1
        %s100 = scalar_select %p99, %s96, 1
        %s101 = smul.addr %s98, 2
        %s102 = sadd.s32 %s100, %s101
        %s103 = smul.addr %s102, 8
        %s104 = scalar_lea.vmem %s0, %s103
        %s105 = smul.u32 8, %s14
        %s106 = smul.u32 2, %s15
      $region20: #{channel_attention.2} parent=15 // pred_fallthru
        _
    $region16: #{channel_attention.2} parent=5 // pred_fallthru
      _
    %p107 = scmp.le.s32.totalorder 1, %s7
    %p108 = scmp.lt.s32.totalorder %s7, 3
    %p109 = pnand %p107, %p108
    %p110 = pneg %p109
    // Predicated region
    $region21: #{channel_attention.2} parent=5 // pred_check
      _
    $region22: #{channel_attention.2} parent=5 // pred_check_branch
      %112 = sbr.rel (%p109) target = $region24
    $region23: #{channel_attention.2} parent=5 // pred_region
      %s113 = ssub.s32 %s7, 1
      %s114 = smul.u32 8, %s16
      %s115 = smul.u32 2, %s17
      %p116 = scmp.lt.s32.totalorder %s114, 15
      %s117 = scalar_select %p116, %s114, 15
      %p118 = scmp.lt.s32.totalorder %s115, 1
      %s119 = scalar_select %p118, %s115, 1
      %s120 = smul.addr %s117, 2
      %s121 = sadd.s32 %s119, %s120
      %s122 = smul.addr %s121, 8
      %s123 = scalar_lea.vmem %s0, %s122
      %p124 = pneg %p47
      %p125 = pneg %p44
      %p126 = pneg %p73
      %p127 = pneg %p70
      %p128 = scmp.lt.s32.totalorder %s16, 1
      %s129 = scalar_select %p128, %s16, 1
      %s130 = scalar_lea.vmem %s1, %s129
      %s131 = smul.u32 8, %s16
      %s132 = smul.u32 2, %s17
      %p133 = scmp.lt.s32.totalorder %s131, 15
      %s134 = scalar_select %p133, %s131, 15
      %p135 = scmp.lt.s32.totalorder %s132, 1
      %s136 = scalar_select %p135, %s132, 1
      %s137 = smul.addr %s134, 2
      %s138 = sadd.s32 %s136, %s137
      %s139 = smul.addr %s138, 8
      %s140 = scalar_lea.vmem %s0, %s139
      %s141 = smul.u32 8, %s16
      %s142 = smul.u32 2, %s17
      %p143 = scmp.lt.s32.totalorder %s16, 1
      %s144 = scalar_select %p143, %s16, 1
      %s145 = scalar_lea.vmem %s1, %s144
      %p146 = scmp.eq.s32.totalorder %s17, 0
      // Predicated region
      $region25: #{channel_attention.2} parent=23 // pred_check
        %p147 = pneg %p146
      $region26: #{channel_attention.2} parent=23 // pred_check_branch
        %149 = sbr.rel (%p147) target = $region28
      $region27: #{channel_attention.2} parent=23 // pred_region
        %150 = vst [vmem:[#allocation2] sm:$0xff] 0.0
        %151 = vst [vmem:[#allocation2 + $0x8] sm:$0xff] 0.0
        %152 = vst [vmem:[#allocation2 + $0x10] sm:$0xff] 0.0
        %153 = vst [vmem:[#allocation2 + $0x18] sm:$0xff] 0.0
        %154 = vst [vmem:[#allocation2 + $0x20] sm:$0xff] 0.0
        %155 = vst [vmem:[#allocation2 + $0x28] sm:$0xff] 0.0
        %156 = vst [vmem:[#allocation2 + $0x30] sm:$0xff] 0.0
        %157 = vst [vmem:[#allocation2 + $0x38] sm:$0xff] 0.0
      $region28: #{channel_attention.2} parent=23 // pred_fallthru
        _
      %v158 = vld [vmem:[%s140] sm:$0xff]
      %v159 = vld [vmem:[%s140 + $0x10] sm:$0xff]
      %v160 = vld [vmem:[%s140 + $0x20] sm:$0xff]
      %v161 = vld [vmem:[%s140 + $0x30] sm:$0xff]
      %v162 = vld [vmem:[%s140 + $0x40] sm:$0xff]
      %v163 = vld [vmem:[%s140 + $0x50] sm:$0xff]
      %v164 = vld [vmem:[%s140 + $0x60] sm:$0xff]
      %v165 = vld [vmem:[%s140 + $0x70] sm:$0xff]
      %v166 = vld [vmem:[#allocation2] sm:$0xff]
      %v167 = vld [vmem:[#allocation2 + $0x8] sm:$0xff]
      %v168 = vld [vmem:[#allocation2 + $0x10] sm:$0xff]
      %v169 = vld [vmem:[#allocation2 + $0x18] sm:$0xff]
      %v170 = vld [vmem:[#allocation2 + $0x20] sm:$0xff]
      %v171 = vld [vmem:[#allocation2 + $0x28] sm:$0xff]
      %v172 = vld [vmem:[#allocation2 + $0x30] sm:$0xff]
      %v173 = vld [vmem:[#allocation2 + $0x38] sm:$0xff]
      %v174 = vadd.f32 %v166, %v158
      %v175 = vadd.f32 %v167, %v159
      %v176 = vadd.f32 %v168, %v160
      %v177 = vadd.f32 %v169, %v161
      %v178 = vadd.f32 %v170, %v162
      %v179 = vadd.f32 %v171, %v163
      %v180 = vadd.f32 %v172, %v164
      %v181 = vadd.f32 %v173, %v165
      %182 = vst [vmem:[#allocation2] sm:$0xff] %v174
      %183 = vst [vmem:[#allocation2 + $0x8] sm:$0xff] %v175
      %184 = vst [vmem:[#allocation2 + $0x10] sm:$0xff] %v176
      %185 = vst [vmem:[#allocation2 + $0x18] sm:$0xff] %v177
      %186 = vst [vmem:[#allocation2 + $0x20] sm:$0xff] %v178
      %187 = vst [vmem:[#allocation2 + $0x28] sm:$0xff] %v179
      %188 = vst [vmem:[#allocation2 + $0x30] sm:$0xff] %v180
      %189 = vst [vmem:[#allocation2 + $0x38] sm:$0xff] %v181
      %v190 = vld [vmem:[%s140 + $0x8] sm:$0xff]
      %v191 = vld [vmem:[%s140 + $0x18] sm:$0xff]
      %v192 = vld [vmem:[%s140 + $0x28] sm:$0xff]
      %v193 = vld [vmem:[%s140 + $0x38] sm:$0xff]
      %v194 = vld [vmem:[%s140 + $0x48] sm:$0xff]
      %v195 = vld [vmem:[%s140 + $0x58] sm:$0xff]
      %v196 = vld [vmem:[%s140 + $0x68] sm:$0xff]
      %v197 = vld [vmem:[%s140 + $0x78] sm:$0xff]
      %v198 = vld [vmem:[#allocation2] sm:$0xff]
      %v199 = vld [vmem:[#allocation2 + $0x8] sm:$0xff]
      %v200 = vld [vmem:[#allocation2 + $0x10] sm:$0xff]
      %v201 = vld [vmem:[#allocation2 + $0x18] sm:$0xff]
      %v202 = vld [vmem:[#allocation2 + $0x20] sm:$0xff]
      %v203 = vld [vmem:[#allocation2 + $0x28] sm:$0xff]
      %v204 = vld [vmem:[#allocation2 + $0x30] sm:$0xff]
      %v205 = vld [vmem:[#allocation2 + $0x38] sm:$0xff]
      %v206 = vadd.f32 %v198, %v190
      %v207 = vadd.f32 %v199, %v191
      %v208 = vadd.f32 %v200, %v192
      %v209 = vadd.f32 %v201, %v193
      %v210 = vadd.f32 %v202, %v194
      %v211 = vadd.f32 %v203, %v195
      %v212 = vadd.f32 %v204, %v196
      %v213 = vadd.f32 %v205, %v197
      %214 = vst [vmem:[#allocation2] sm:$0xff] %v206
      %215 = vst [vmem:[#allocation2 + $0x8] sm:$0xff] %v207
      %216 = vst [vmem:[#allocation2 + $0x10] sm:$0xff] %v208
      %217 = vst [vmem:[#allocation2 + $0x18] sm:$0xff] %v209
      %218 = vst [vmem:[#allocation2 + $0x20] sm:$0xff] %v210
      %219 = vst [vmem:[#allocation2 + $0x28] sm:$0xff] %v211
      %220 = vst [vmem:[#allocation2 + $0x30] sm:$0xff] %v212
      %221 = vst [vmem:[#allocation2 + $0x38] sm:$0xff] %v213
      // Predicated region
      $region29: #{channel_attention.2} parent=23 // pred_check
        %p222 = pneg %p146
      $region30: #{channel_attention.2} parent=23 // pred_check_branch
        %224 = sbr.rel (%p222) target = $region32
      $region31: #{channel_attention.2} parent=23 // pred_region
        %v225 = vld [vmem:[#allocation2] sm:$0xff]
        %v226 = vld [vmem:[#allocation2 + $0x8] sm:$0xff]
        %v227 = vld [vmem:[#allocation2 + $0x10] sm:$0xff]
        %v228 = vld [vmem:[#allocation2 + $0x18] sm:$0xff]
        %v229 = vld [vmem:[#allocation2 + $0x20] sm:$0xff]
        %v230 = vld [vmem:[#allocation2 + $0x28] sm:$0xff]
        %v231 = vld [vmem:[#allocation2 + $0x30] sm:$0xff]
        %v232 = vld [vmem:[#allocation2 + $0x38] sm:$0xff]
        %233 = vadd.xlane.f32.xlu0 %v225
        %v234 = vpop.xlane.xlu0 %233
        %235 = vadd.xlane.f32.xlu0 %v226
        %v236 = vpop.xlane.xlu0 %235
        %237 = vadd.xlane.f32.xlu0 %v227
        %v238 = vpop.xlane.xlu0 %237
        %239 = vadd.xlane.f32.xlu0 %v228
        %v240 = vpop.xlane.xlu0 %239
        %241 = vadd.xlane.f32.xlu0 %v229
        %v242 = vpop.xlane.xlu0 %241
        %243 = vadd.xlane.f32.xlu0 %v230
        %v244 = vpop.xlane.xlu0 %243
        %245 = vadd.xlane.f32.xlu0 %v231
        %v246 = vpop.xlane.xlu0 %245
        %247 = vadd.xlane.f32.xlu0 %v232
        %v248 = vpop.xlane.xlu0 %247
        %v249 = vmul.f32 %v234, 0.00390625
        %v250 = vmul.f32 %v236, 0.00390625
        %v251 = vmul.f32 %v238, 0.00390625
        %v252 = vmul.f32 %v240, 0.00390625
        %v253 = vmul.f32 %v242, 0.00390625
        %v254 = vmul.f32 %v244, 0.00390625
        %v255 = vmul.f32 %v246, 0.00390625
        %v256 = vmul.f32 %v248, 0.00390625
        %v265 = vlaneseq
        %v266 = vand.u32 %v265, 127
        %v267 = vperm.slane %v249, %v266
        %v268 = vadd.s32 %v266, 4294967288
        %v269 = vperm.slane %v250, %v268
        %vm270 = vcmask 130112
        %v271 = vsel %vm270, %v269, %v267
        %v272 = vadd.s32 %v266, 4294967280
        %v273 = vperm.slane %v251, %v272
        %vm274 = vcmask 195712
        %v275 = vsel %vm274, %v273, %v271
        %v276 = vadd.s32 %v266, 4294967272
        %v277 = vperm.slane %v252, %v276
        %vm278 = vcmask 261312
        %v279 = vsel %vm278, %v277, %v275
        %v280 = vadd.s32 %v266, 4294967264
        %v281 = vperm.slane %v253, %v280
        %vm282 = vcmask 326912
        %v283 = vsel %vm282, %v281, %v279
        %v284 = vadd.s32 %v266, 4294967256
        %v285 = vperm.slane %v254, %v284
        %vm286 = vcmask 392512
        %v287 = vsel %vm286, %v285, %v283
        %v288 = vadd.s32 %v266, 4294967248
        %v289 = vperm.slane %v255, %v288
        %vm290 = vcmask 458112
        %v291 = vsel %vm290, %v289, %v287
        %v292 = vadd.s32 %v266, 4294967240
        %v293 = vperm.slane %v256, %v292
        %vm294 = vcmask 523712
        %v295 = vsel %vm294, %v293, %v291
        %vm297 = vcmask 516096
        %298 = vst.msk [vmem:[%s145] sm:$0x1] %vm297, %v295
      $region32: #{channel_attention.2} parent=23 // pred_fallthru
        _
      %p299 = scmp.lt.s32.totalorder %s16, 1
      %s300 = scalar_select %p299, %s16, 1
      %s301 = scalar_lea.vmem %s1, %s300
      // Predicated region
      $region33: #{channel_attention.2} parent=23 // pred_check
        %p302 = pneg %p70
      $region34: #{channel_attention.2} parent=23 // pred_check_branch
        %304 = sbr.rel (%p302) target = $region36
      $region35: #{channel_attention.2} parent=23 // pred_region
        _
      $region36: #{channel_attention.2} parent=23 // pred_fallthru
        _
    $region24: #{channel_attention.2} parent=5 // pred_fallthru
      _
    %p305 = scmp.le.s32.totalorder 2, %s7
    // Predicated region
    $region37: #{channel_attention.2} parent=5 // pred_check
      %p306 = pneg %p305
    $region38: #{channel_attention.2} parent=5 // pred_check_branch
      %308 = sbr.rel (%p306) target = $region40
    $region39: #{channel_attention.2} parent=5 // pred_region
      %s309 = ssub.s32 %s7, 2
      // Predicated region
      $region41: #{channel_attention.2} parent=39 // pred_check
        %p310 = pneg %p76
      $region42: #{channel_attention.2} parent=39 // pred_check_branch
        %312 = sbr.rel (%p310) target = $region44
      $region43: #{channel_attention.2} parent=39 // pred_region
        %p313 = scmp.lt.s32.totalorder %s18, 1
        %s314 = scalar_select %p313, %s18, 1
        %s315 = scalar_lea.vmem %s1, %s314
      $region44: #{channel_attention.2} parent=39 // pred_fallthru
        _
    $region40: #{channel_attention.2} parent=5 // pred_fallthru
      _
  $region6: #{channel_attention.2} parent=0 // loop_footer
    %s11 = sadd.s32 1, %s7
  $region7: #{channel_attention.2} parent=0 // loop_footer_branch
    %6 = sbr.rel target = $region3
  $region8: #{channel_attention.2} parent=0 // loop_exit
    _

// kernel: channel_attention.3
$region0: #{channel_attention.3}
  #allocation0 [shape = 'u32[]', space=smem, size = 0x4, offset = 0x4, fixed_abs, tag = 'smem constant byte address 0x4 - core index']
  #allocation1 [shape = 'u32[72,128]{1,0:T(1,128)}', space=vmem, size = 0x9000, scoped, tag = 'internal scratch']
  %s0 = inlined_call_operand.vmem [shape: f32[2,64], index: 0, kind: input, shape index: {}]
  %s1 = inlined_call_operand.vmem [shape: f32[64,4], index: 1, kind: input, shape index: {}]
  %s2 = inlined_call_operand.vmem [shape: f32[1,4], index: 2, kind: input, shape index: {}]
  %s3 = inlined_call_operand.vmem [shape: f32[4,64], index: 3, kind: input, shape index: {}]
  %s4 = inlined_call_operand.vmem [shape: f32[1,64], index: 4, kind: input, shape index: {}]
  %s5 = inlined_call_operand.hbm [shape: f32[2,64], index: 5, kind: output, shape index: {}]
  %s6 = sld [smem:[#allocation0]]
  $region30: #{channel_attention.3} parent=0
    _
  %s8 = ssub.s32 1, %s6
  %s9 = scalar_select 0, %s8, %s6
  $region1: #{channel_attention.3} parent=0
    #allocation2 [shape = 'u8[1024]{0}', space=vmem, size = 0x400, scoped, tag = 'output window, operand 0, single buffered']
    #allocation3 [shape = 's32[1]{0}', space=sflag, size = 0x4, scoped, tag = 'scoped memory for channel_attention.3']
    %10 = vsyncpa [#allocation3], 0
    // Predicated region
    $region2: #{channel_attention.3} parent=1 // pred_check
      _
    $region3: #{channel_attention.3} parent=1 // pred_check_branch
      %12 = sbr.rel (0) target = $region5
    $region4: #{channel_attention.3} parent=1 // pred_region
      _
    $region5: #{channel_attention.3} parent=1 // pred_fallthru
      _
    // Predicated region
    $region6: #{channel_attention.3} parent=1 // pred_check
      _
    $region7: #{channel_attention.3} parent=1 // pred_check_branch
      %14 = sbr.rel (0) target = $region9
    $region8: #{channel_attention.3} parent=1 // pred_region
      _
    $region9: #{channel_attention.3} parent=1 // pred_fallthru
      _
    // Predicated region
    $region10: #{channel_attention.3} parent=1 // pred_check
      _
    $region11: #{channel_attention.3} parent=1 // pred_check_branch
      %16 = sbr.rel (0) target = $region13
    $region12: #{channel_attention.3} parent=1 // pred_region
      _
    $region13: #{channel_attention.3} parent=1 // pred_fallthru
      _
    // Predicated region
    $region14: #{channel_attention.3} parent=1 // pred_check
      _
    $region15: #{channel_attention.3} parent=1 // pred_check_branch
      %18 = sbr.rel (0) target = $region17
    $region16: #{channel_attention.3} parent=1 // pred_region
      _
    $region17: #{channel_attention.3} parent=1 // pred_fallthru
      _
    // Predicated region
    $region18: #{channel_attention.3} parent=1 // pred_check
      _
    $region19: #{channel_attention.3} parent=1 // pred_check_branch
      %20 = sbr.rel (0) target = $region21
    $region20: #{channel_attention.3} parent=1 // pred_region
      _
    $region21: #{channel_attention.3} parent=1 // pred_fallthru
      _
    %v21 = vld [vmem:[%s0] sm:$0x3]
    %v22 = vld [vmem:[%s1] sm:$0xff]
    %v23 = vld [vmem:[%s1 + $0x8] sm:$0xff]
    %v24 = vld [vmem:[%s1 + $0x10] sm:$0xff]
    %v25 = vld [vmem:[%s1 + $0x18] sm:$0xff]
    %v26 = vld [vmem:[%s1 + $0x20] sm:$0xff]
    %v27 = vld [vmem:[%s1 + $0x28] sm:$0xff]
    %v28 = vld [vmem:[%s1 + $0x30] sm:$0xff]
    %v29 = vld [vmem:[%s1 + $0x38] sm:$0xff]
    %v30 = vld [vmem:[%s2] sm:$0x1]
    %v32 = vperm.slane %v30, 0
    %vm34 = vcmask 523264
    %v36 = vsel %vm34, %v21, 0
    %38 = vmatpush.msra.mxu0 0.0
    %39 = vmatpush.msra.mxu0 0.0
    %40 = vmatpush.msra.mxu0 0.0
    %41 = vmatpush.msra.mxu0 0.0
    %42 = vmatpush.msra.mxu0 0.0
    %43 = vmatpush.msra.mxu0 0.0
    %44 = vmatpush.msra.mxu0 0.0
    %45 = vmatpush.msra.mxu0 0.0
    %46 = vmatpush.msra.mxu0 %v29
    %47 = vmatpush.msra.mxu0 %v28
    %48 = vmatpush.msra.mxu0 %v27
    %49 = vmatpush.msra.mxu0 %v26
    %50 = vmatpush.msra.mxu0 %v25
    %51 = vmatpush.msra.mxu0 %v24
    %52 = vmatpush.msra.mxu0 %v23
    %53 = vmatpush.msra.mxu0 %v22
    %54 = vmatmul.f32.gmra.mxu0 %v36
    %v55 = vpop.f32.mrf.mxu0
    %v56 = vadd.f32 %v32, %v55
    %57 = vdwg.mxu0
    %v58 = vmax.f32 %v56, 0.0
    %v59 = vld [vmem:[%s3] sm:$0xf]
    %v60 = vld [vmem:[%s4] sm:$0x1]
    %v62 = vperm.slane %v60, 0
    %vm64 = vcmask 31744
    %v66 = vsel %vm64, %v58, 0
    %vm68 = vcmask 1043456
    %v70 = vsel %vm68, %v59, 0
    %72 = vmatpush.msra.mxu0 0.0
    %73 = vmatpush.msra.mxu0 0.0
    %74 = vmatpush.msra.mxu0 0.0
    %75 = vmatpush.msra.mxu0 0.0
    %76 = vmatpush.msra.mxu0 0.0
    %77 = vmatpush.msra.mxu0 0.0
    %78 = vmatpush.msra.mxu0 0.0
    %79 = vmatpush.msra.mxu0 0.0
    %80 = vmatpush.msra.mxu0 0.0
    %81 = vmatpush.msra.mxu0 0.0
    %82 = vmatpush.msra.mxu0 0.0
    %83 = vmatpush.msra.mxu0 0.0
    %84 = vmatpush.msra.mxu0 0.0
    %85 = vmatpush.msra.mxu0 0.0
    %86 = vmatpush.msra.mxu0 0.0
    %87 = vmatpush.msra.mxu0 %v70
    %88 = vmatmul.f32.gmra.mxu0 %v66
    %v89 = vpop.f32.mrf.mxu0
    %v90 = vadd.f32 %v62, %v89
    %91 = vdwg.mxu0
    %v92 = vxor.u32 %v90, 2147483648
    %v93 = vmul.f32 %v92, 1.442695
    %v94 = vpow.pop %v93
    %v95 = vadd.f32 %v94, 1.0
    %v96 = vrcp.pop %v95
    %v97 = vmul.f32 %v95, %v96
    %v98 = vsub.f32 1.0, %v97
    %v99 = vmul.f32 %v96, %v98
    %v100 = vadd.f32 %v96, %v99
    %vm101 = vweird.f32 %v95
    %vm102 = vweird.f32 %v96
    %vm103 = vmor %vm101, %vm102
    %v104 = vsel %vm103, %v96, %v100
    %v105 = vand.u32 2147483647, %v95
    %vm106 = vcmp.eq.f32.partialorder %v105, 8.507059e+37
    %v107 = vand.u32 %v95, 2147483648
    %v108 = vor.u32 1.1754944e-38, %v107
    %v109 = vsel %vm106, %v108, %v104
    %v110 = vmul.f32 1.0, %v109
    %vm111 = vcmask 517120
    %112 = vst.msk [vmem:[#allocation2] sm:$0x3] %vm111, %v110
    // Predicated region
    $region22: #{channel_attention.3} parent=1 // pred_check
      _
    $region23: #{channel_attention.3} parent=1 // pred_check_branch
      %114 = sbr.rel (0) target = $region25
    $region24: #{channel_attention.3} parent=1 // pred_region
      %116 = vsyncadd [#allocation3], 0
      %s118 = sshll.u32 [#allocation2], 4
      %s119 = int_to_ptr.vmem [resolvable:$true] %s118
      %s120 = sshll.u32 %s5, 4
      %s121 = int_to_ptr.hbm [resolvable:$true] %s120
      %123 = dma.vmem_to_hbm [thread:$0]  %s119, 32, %s121, [#allocation3]
    $region25: #{channel_attention.3} parent=1 // pred_fallthru
      _
    // Predicated region
    $region26: #{channel_attention.3} parent=1 // pred_check
      _
    $region27: #{channel_attention.3} parent=1 // pred_check_branch
      %125 = sbr.rel (0) target = $region29
    $region28: #{channel_attention.3} parent=1 // pred_region
      %127 = dma.done [#allocation3], 32
    $region29: #{channel_attention.3} parent=1 // pred_fallthru
      _
    %128 = vsyncpa [#allocation3], 1

</llo_original>
